<compile_context>
chip_gen: v7x
topology: tpu7x:2x2x1
jax: 0.10.0
libtpu: 0.0.40
codegen_flags: <defaults>
</compile_context>

<pallas_src>
import jax
import jax.numpy as jnp
import numpy as np
from jax.experimental import pallas as pl
from jax.experimental.pallas import tpu as pltpu


def _bilinear_matrix(in_size, out_size):
    """PyTorch nn.Upsample(mode='bilinear', align_corners=True) interpolation matrix."""
    U = np.zeros((out_size, in_size), dtype=np.float32)
    if out_size == 1 or in_size == 1:
        U[:, 0] = 1.0
        return U
    scale = (in_size - 1) / (out_size - 1)
    for o in range(out_size):
        src = o * scale
        i0 = int(np.floor(src))
        i1 = min(i0 + 1, in_size - 1)
        f = src - i0
        U[o, i0] += 1.0 - f
        U[o, i1] += f
    return U


def _pick_images_per_step(n_batch, max_per_step=8):
    """Largest divisor of n_batch that (a) caps per-step VMEM and (b) keeps the grid
    length >= 2 when possible so both v7x TensorCores get work."""
    min_grid = 2 if n_batch >= 4 else 1
    for nb in range(min(max_per_step, n_batch), 0, -1):
        if n_batch % nb == 0 and n_batch // nb >= min_grid:
            return nb
    return 1


def decoder_block_kernel(x_ref, ah_ref, g_ref, b_ref, o_ref):
    """One block of Nb images per grid step.

    x_ref : (Nb, H, W*C_in)            inputs, channels folded into lanes
    ah_ref: (3*Nb*H_out, Nb*H)         block-diag H-upsample matrices, one block per
                                       (conv row shift dy, image); conv's top/bottom
                                       zero-pad rows folded in
    g_ref : (3*W*C_in, W_out*C_out)    conv mixing matrices with the W-upsample and
                                       left/right zero pad folded in, stacked over dy
    b_ref : (1, W_out*C_out)           bias tiled across W_out
    o_ref : (Nb, H_out, W_out*C_out)   lane-dense output
    """
    nb, h_out = o_ref.shape[0], o_ref.shape[1]
    m = nb * h_out                                       # rows per dy block (mult. of 8)

    x_flat = x_ref[...].reshape(nb * x_ref.shape[1], x_ref.shape[2])     # (Nb*H, W*C_in)

    # H-axis bilinear upsample (+ conv top/bottom zero pad), for all 3 conv row shifts
    # and all Nb images in one matmul.  Rows ordered [dy, image, h] so the dy slices
    # below are sublane-aligned.
    y = jnp.dot(ah_ref[...], x_flat,
                preferred_element_type=jnp.float32)      # (3*Nb*H_out, W*C_in)

    # Fused 3x3-conv LHS: lane-concatenate the three aligned dy blocks.
    lhs = jnp.concatenate([y[dy * m:(dy + 1) * m, :] for dy in range(3)],
                          axis=1)                        # (Nb*H_out, 3*W*C_in)

    # Single conv matmul (K = 3*W*C_in); the W-upsample is already folded into g_ref.
    acc = jnp.dot(lhs, g_ref[...],
                  preferred_element_type=jnp.float32)    # (Nb*H_out, W_out*C_out)

    acc = acc + b_ref[...]                               # bias broadcast
    o_ref[...] = jnp.maximum(acc, 0.0).reshape(o_ref.shape).astype(o_ref.dtype)


def decoder_block(x_nchw, w9, bias, images_per_step=None):
    """x_nchw: (N, C_in, H, W) f32.  w9: (9, C_in, C_out).  bias: (C_out,).
    Returns (N, C_out, 2H, 2W) f32 (PyTorch NCHW convention)."""
    N, C_in, H, W = x_nchw.shape
    C_out = w9.shape[-1]
    H_out, W_out = 2 * H, 2 * W
    nb = images_per_step or _pick_images_per_step(N)
    assert N % nb == 0

    # Input: NCHW -> (N, H, W*C_in) so lanes = W*C_in (lane-dense, no in-kernel relayout).
    x = jnp.transpose(x_nchw, (0, 2, 3, 1)).reshape(N, H, W * C_in)

    # (1) Stacked H-upsample matrices: for each conv row shift dy, the rows
    #     A_h_pad[dy:dy+H_out] (zero pad rows folded in), block-diagonal over the nb
    #     images in a step.  Row order [dy, image, h] keeps kernel slices aligned.
    U_h = _bilinear_matrix(H, H_out)
    A_h_pad = np.zeros((H_out + 2, H), np.float32)
    A_h_pad[1:H_out + 1, :] = U_h
    eye_nb = np.eye(nb, dtype=np.float32)
    A_blk = np.concatenate(
        [np.kron(eye_nb, A_h_pad[dy:dy + H_out, :]) for dy in range(3)], axis=0)
    A_blk = jnp.asarray(A_blk)                           # (3*nb*H_out, nb*H)

    # (2) Conv mixing matrices with the W-upsample and left/right zero pad folded in:
    #     T[dx, w_in, w] = U_w[w+dx-1, w_in] if padded column w+dx is interior, else 0.
    #     G[dy, w_in*C_in+ci, w*C_out+co] = sum_dx T[dx, w_in, w] * w[dy, dx, ci, co].
    U_w = _bilinear_matrix(W, W_out)
    T = np.zeros((3, W, W_out), np.float32)
    for dx in range(3):
        for w in range(W_out):
            q = w + dx                                    # padded column index
            if 1 <= q <= W_out:
                T[dx, :, w] = U_w[q - 1, :]
    w_hwio = w9.reshape(3, 3, C_in, C_out)                # (ky, kx, ci, co)
    G = jnp.einsum('dvw,kdio->kviwo', jnp.asarray(T), w_hwio)
    G = G.reshape(3 * W * C_in, W_out * C_out)            # stacked over dy (row-major)

    # Bias tiled across W_out so it broadcasts over the lane-dense accumulator.
    b_tiled = jnp.tile(bias, W_out).reshape(1, W_out * C_out)

    out = pl.pallas_call(
        decoder_block_kernel,
        out_shape=jax.ShapeDtypeStruct((N, H_out, W_out * C_out), jnp.float32),
        grid_spec=pltpu.PrefetchScalarGridSpec(
            num_scalar_prefetch=0,
            grid=(N // nb,),
            in_specs=[
                pl.BlockSpec((nb, H, W * C_in), lambda n: (n, 0, 0)),
                pl.BlockSpec((3 * nb * H_out, nb * H), lambda n: (0, 0)),
                pl.BlockSpec((3 * W * C_in, W_out * C_out), lambda n: (0, 0)),
                pl.BlockSpec((1, W_out * C_out), lambda n: (0, 0)),
            ],
            out_specs=pl.BlockSpec((nb, H_out, W_out * C_out), lambda n: (n, 0, 0)),
        ),
        compiler_params=pltpu.CompilerParams(dimension_semantics=("parallel",)),
    )(x, A_blk, G, b_tiled)
    # TODO(synk): at production widths (W>=64, C>=64) add a grid axis tiling the
    # W_out*C_out lane dim of G / the output (and set vmem_limit_bytes) so the resident
    # mixing matrix stays under the v7x 64 MiB VMEM ceiling.

    # Lane-dense (N, H_out, W_out*C_out) -> PyTorch NCHW.
    out = out.reshape(N, H_out, W_out, C_out)
    return jnp.transpose(out, (0, 3, 1, 2))


def reference(x_nchw, w9, bias):
    """Pure-JAX reference matching PyTorch semantics."""
    N, C_in, H, W = x_nchw.shape
    C_out = w9.shape[-1]
    H_out, W_out = 2 * H, 2 * W
    x = jnp.transpose(x_nchw, (0, 2, 3, 1))
    U_h = jnp.asarray(_bilinear_matrix(H, H_out))
    U_w = jnp.asarray(_bilinear_matrix(W, W_out))
    up = jnp.einsum('oh,nhwc->nowc', U_h, x)
    up = jnp.einsum('pw,nowc->nopc', U_w, up)
    w_hwio = w9.reshape(3, 3, C_in, C_out)
    out = jax.lax.conv_general_dilated(
        up, w_hwio, (1, 1), 'SAME',
        dimension_numbers=('NHWC', 'HWIO', 'NHWC'))
    out = jnp.maximum(out + bias, 0.0)
    return jnp.transpose(out, (0, 3, 1, 2))


if __name__ == "__main__":
    key = jax.random.PRNGKey(0)
    k1, k2, k3 = jax.random.split(key, 3)

    N, C_in, C_out, H, W = 2, 4, 8, 16, 16
    x = jax.random.normal(k1, (N, C_in, H, W), jnp.float32)
    # Conv2d(in_channels=4, out_channels=8, k=3) params, stored as (9, C_in, C_out).
    w9 = jax.random.normal(k2, (9, C_in, C_out), jnp.float32) * 0.1
    b = jax.random.normal(k3, (C_out,), jnp.float32) * 0.1

    out = decoder_block(x, w9, b)
    out = jax.block_until_ready(out)

    ref = reference(x, w9, b)
    assert out.shape == (N, C_out, 2 * H, 2 * W)
    np.testing.assert_allclose(np.asarray(out), np.asarray(ref),
                               rtol=1e-4, atol=1e-4)
    print("KERNEL_OK")
</pallas_src>

<mosaic_0001>
module attributes {stable_mosaic.version = 11 : i64} {
  func.func @decoder_block_kernel(%arg0: i32, %arg1: memref<2x16x64xf32, #tpu.memory_space<vmem>>, %arg2: memref<192x32xf32, #tpu.memory_space<vmem>>, %arg3: memref<192x256xf32, #tpu.memory_space<vmem>>, %arg4: memref<1x256xf32, #tpu.memory_space<vmem>>, %arg5: memref<2x32x256xf32, #tpu.memory_space<vmem>>) attributes {dimension_semantics = [#tpu.dimension_semantics<parallel>], iteration_bounds = array<i64: 1>, scalar_prefetch = 0 : i64, scratch_operands = 0 : i64, tpu.core_type = #tpu.core_type<tc>, window_params = [{transform_indices = @transform_0, window_bounds = array<i64: 2, 16, 64>}, {pipeline_mode = #tpu.pipeline_mode<synchronous>, transform_indices = @transform_1, window_bounds = array<i64: 192, 32>}, {pipeline_mode = #tpu.pipeline_mode<synchronous>, transform_indices = @transform_2, window_bounds = array<i64: 192, 256>}, {pipeline_mode = #tpu.pipeline_mode<synchronous>, transform_indices = @transform_3, window_bounds = array<i64: 1, 256>}, {transform_indices = @transform_4, window_bounds = array<i64: 2, 32, 256>}]} {
    %c0 = arith.constant 0 : index
    %c0_0 = arith.constant 0 : index
    %c0_1 = arith.constant 0 : index
    %0 = vector.load %arg1[%c0, %c0_0, %c0_1] : memref<2x16x64xf32, #tpu.memory_space<vmem>>, vector<2x16x64xf32>
    %1 = vector.shape_cast %0 : vector<2x16x64xf32> to vector<32x64xf32>
    %c0_2 = arith.constant 0 : index
    %c0_3 = arith.constant 0 : index
    %2 = vector.load %arg2[%c0_2, %c0_3] : memref<192x32xf32, #tpu.memory_space<vmem>>, vector<192x32xf32>
    %cst = arith.constant dense<0.000000e+00> : vector<192x64xf32>
    %3 = tpu.matmul %2, %1, %cst {dimension_numbers = #tpu.dot_dimension_numbers<[1], [0], [0], [1], [0, 0, 1, 1], [], []>} : vector<192x32xf32>, vector<32x64xf32>, vector<192x64xf32> -> vector<192x64xf32>
    %4 = vector.extract_strided_slice %3 {offsets = [0, 0], sizes = [64, 64], strides = [1, 1]} : vector<192x64xf32> to vector<64x64xf32>
    %5 = vector.extract_strided_slice %3 {offsets = [64, 0], sizes = [64, 64], strides = [1, 1]} : vector<192x64xf32> to vector<64x64xf32>
    %6 = vector.extract_strided_slice %3 {offsets = [128, 0], sizes = [64, 64], strides = [1, 1]} : vector<192x64xf32> to vector<64x64xf32>
    %7 = tpu.concatenate %4, %5, %6 in 1 : vector<64x64xf32>, vector<64x64xf32>, vector<64x64xf32> -> vector<64x192xf32>
    %c0_4 = arith.constant 0 : index
    %c0_5 = arith.constant 0 : index
    %8 = vector.load %arg3[%c0_4, %c0_5] : memref<192x256xf32, #tpu.memory_space<vmem>>, vector<192x256xf32>
    %cst_6 = arith.constant dense<0.000000e+00> : vector<64x256xf32>
    %9 = tpu.matmul %7, %8, %cst_6 {dimension_numbers = #tpu.dot_dimension_numbers<[1], [0], [0], [1], [0, 0, 1, 1], [], []>} : vector<64x192xf32>, vector<192x256xf32>, vector<64x256xf32> -> vector<64x256xf32>
    %c0_7 = arith.constant 0 : index
    %c0_8 = arith.constant 0 : index
    %10 = vector.load %arg4[%c0_7, %c0_8] : memref<1x256xf32, #tpu.memory_space<vmem>>, vector<1x256xf32>
    %11 = vector.broadcast %10 : vector<1x256xf32> to vector<64x256xf32>
    %12 = arith.addf %9, %11 : vector<64x256xf32>
    %cst_9 = arith.constant 0.000000e+00 : f32
    %13 = vector.broadcast %cst_9 : f32 to vector<64x256xf32>
    %14 = arith.maximumf %12, %13 : vector<64x256xf32>
    %15 = vector.shape_cast %14 : vector<64x256xf32> to vector<2x32x256xf32>
    %c0_10 = arith.constant 0 : index
    %c0_11 = arith.constant 0 : index
    %c0_12 = arith.constant 0 : index
    %16 = vector.load %arg5[%c0_10, %c0_11, %c0_12] : memref<2x32x256xf32, #tpu.memory_space<vmem>>, vector<2x32x256xf32>
    tpu.vector_store %arg5[%c0_10, %c0_11, %c0_12], %15 {strides = array<i32>} : memref<2x32x256xf32, #tpu.memory_space<vmem>>, vector<2x32x256xf32>,
    return
  }
  func.func @transform_0(%arg0: i32) -> (i32, i32, i32) {
    %c0_i32 = arith.constant 0 : i32
    %c0_i32_0 = arith.constant 0 : i32
    %c0_i32_1 = arith.constant 0 : i32
    return %arg0, %c0_i32, %c0_i32_0 : i32, i32, i32
  }
  func.func @transform_1(%arg0: i32) -> (i32, i32) {
    %c0_i32 = arith.constant 0 : i32
    %c0_i32_0 = arith.constant 0 : i32
    %c0_i32_1 = arith.constant 0 : i32
    return %c0_i32, %c0_i32_0 : i32, i32
  }
  func.func @transform_2(%arg0: i32) -> (i32, i32) {
    %c0_i32 = arith.constant 0 : i32
    %c0_i32_0 = arith.constant 0 : i32
    %c0_i32_1 = arith.constant 0 : i32
    return %c0_i32, %c0_i32_0 : i32, i32
  }
  func.func @transform_3(%arg0: i32) -> (i32, i32) {
    %c0_i32 = arith.constant 0 : i32
    %c0_i32_0 = arith.constant 0 : i32
    %c0_i32_1 = arith.constant 0 : i32
    return %c0_i32, %c0_i32_0 : i32, i32
  }
  func.func @transform_4(%arg0: i32) -> (i32, i32, i32) {
    %c0_i32 = arith.constant 0 : i32
    %c0_i32_0 = arith.constant 0 : i32
    %c0_i32_1 = arith.constant 0 : i32
    return %arg0, %c0_i32, %c0_i32_0 : i32, i32, i32
  }
}

</mosaic_0001>

<llo_original>
// kernel: tpu_custom_call.1
$region0: #{tpu_custom_call.1}
  #allocation0 [shape = 'u32[]', space=smem, size = 0x4, offset = 0x4, fixed_abs, tag = 'smem constant byte address 0x4 - core index']
  #allocation1 [shape = 'u32[144,128]{1,0:T(1,128)}', space=vmem, size = 0x12000, scoped, tag = 'internal scratch']
  %s0 = inlined_call_operand.vmem [shape: f32[2,16,64], index: 0, kind: input, shape index: {}]
  %s1 = inlined_call_operand.vmem [shape: f32[192,32], index: 1, kind: input, shape index: {}]
  %s2 = inlined_call_operand.hbm [shape: f32[192,256], index: 2, kind: input, shape index: {}]
  %s3 = inlined_call_operand.vmem [shape: f32[1,256], index: 3, kind: input, shape index: {}]
  %s4 = inlined_call_operand.hbm [shape: f32[2,32,256], index: 4, kind: output, shape index: {}]
  %s5 = sld [smem:[#allocation0]]
  $region30: #{tpu_custom_call.1} parent=0
    _
  %s7 = ssub.s32 1, %s5
  %s8 = scalar_select 0, %s7, %s5
  $region1: #{tpu_custom_call.1} parent=0
    #allocation2 [shape = 'u8[196608]{0}', space=vmem, size = 0x30000, scoped, tag = 'input window, operand 2, single buffered']
    #allocation3 [shape = 's32[1]{0}', space=sflag, size = 0x4, scoped, tag = 'scoped memory for tpu_custom_call.1']
    #allocation4 [shape = 's32[1]{0}', space=sflag, size = 0x4, scoped, tag = 'scoped memory for tpu_custom_call.1']
    #allocation5 [shape = 'u8[65536]{0}', space=vmem, size = 0x10000, scoped, tag = 'output window, operand 0, single buffered']
    %9 = vsyncpa [#allocation3], 0
    %10 = vsyncpa [#allocation4], 0
    // Predicated region
    $region2: #{tpu_custom_call.1} parent=1 // pred_check
      _
    $region3: #{tpu_custom_call.1} parent=1 // pred_check_branch
      %12 = sbr.rel (0) target = $region5
    $region4: #{tpu_custom_call.1} parent=1 // pred_region
      _
    $region5: #{tpu_custom_call.1} parent=1 // pred_fallthru
      _
    // Predicated region
    $region6: #{tpu_custom_call.1} parent=1 // pred_check
      _
    $region7: #{tpu_custom_call.1} parent=1 // pred_check_branch
      %14 = sbr.rel (0) target = $region9
    $region8: #{tpu_custom_call.1} parent=1 // pred_region
      _
    $region9: #{tpu_custom_call.1} parent=1 // pred_fallthru
      _
    // Predicated region
    $region10: #{tpu_custom_call.1} parent=1 // pred_check
      _
    $region11: #{tpu_custom_call.1} parent=1 // pred_check_branch
      %16 = sbr.rel (0) target = $region13
    $region12: #{tpu_custom_call.1} parent=1 // pred_region
      %s18 = ssub.s32 6144, 6144
      %19 = vsyncadd [#allocation3], %s18
      %s20 = sshll.u32 [#allocation2], 4
      %s21 = int_to_ptr.vmem [resolvable:$true] %s20
      %26 = dma.hbm_to_vmem [thread:$0]  %s2, 6144, %s21, [#allocation3], 256, 256, 16
    $region13: #{tpu_custom_call.1} parent=1 // pred_fallthru
      _
    // Predicated region
    $region14: #{tpu_custom_call.1} parent=1 // pred_check
      _
    $region15: #{tpu_custom_call.1} parent=1 // pred_check_branch
      %28 = sbr.rel (0) target = $region17
    $region16: #{tpu_custom_call.1} parent=1 // pred_region
      _
    $region17: #{tpu_custom_call.1} parent=1 // pred_fallthru
      _
    // Predicated region
    $region18: #{tpu_custom_call.1} parent=1 // pred_check
      _
    $region19: #{tpu_custom_call.1} parent=1 // pred_check_branch
      %30 = sbr.rel (0) target = $region21
    $region20: #{tpu_custom_call.1} parent=1 // pred_region
      %31 = dma.done [#allocation3], 6144
    $region21: #{tpu_custom_call.1} parent=1 // pred_fallthru
      _
    %v32 = vld [vmem:[%s0] sm:$0xff]
    %v33 = vld [vmem:[%s0 + $0x8] sm:$0xff]
    %v34 = vld [vmem:[%s0 + $0x10] sm:$0xff]
    %v35 = vld [vmem:[%s0 + $0x18] sm:$0xff]
    %v36 = vld [vmem:[%s1] sm:$0xff]
    %v37 = vld [vmem:[%s1 + $0x8] sm:$0xff]
    %v38 = vld [vmem:[%s1 + $0x10] sm:$0xff]
    %v39 = vld [vmem:[%s1 + $0x18] sm:$0xff]
    %v40 = vld [vmem:[%s1 + $0x20] sm:$0xff]
    %v41 = vld [vmem:[%s1 + $0x28] sm:$0xff]
    %v42 = vld [vmem:[%s1 + $0x30] sm:$0xff]
    %v43 = vld [vmem:[%s1 + $0x38] sm:$0xff]
    %v44 = vld [vmem:[%s1 + $0x40] sm:$0xff]
    %v45 = vld [vmem:[%s1 + $0x48] sm:$0xff]
    %v46 = vld [vmem:[%s1 + $0x50] sm:$0xff]
    %v47 = vld [vmem:[%s1 + $0x58] sm:$0xff]
    %v48 = vld [vmem:[%s1 + $0x60] sm:$0xff]
    %v49 = vld [vmem:[%s1 + $0x68] sm:$0xff]
    %v50 = vld [vmem:[%s1 + $0x70] sm:$0xff]
    %v51 = vld [vmem:[%s1 + $0x78] sm:$0xff]
    %v52 = vld [vmem:[%s1 + $0x80] sm:$0xff]
    %v53 = vld [vmem:[%s1 + $0x88] sm:$0xff]
    %v54 = vld [vmem:[%s1 + $0x90] sm:$0xff]
    %v55 = vld [vmem:[%s1 + $0x98] sm:$0xff]
    %v56 = vld [vmem:[%s1 + $0xa0] sm:$0xff]
    %v57 = vld [vmem:[%s1 + $0xa8] sm:$0xff]
    %v58 = vld [vmem:[%s1 + $0xb0] sm:$0xff]
    %v59 = vld [vmem:[%s1 + $0xb8] sm:$0xff]
    %vm60 = vcmask 261120
    %v62 = vsel %vm60, %v36, 0
    %v65 = vsel %vm60, %v37, 0
    %v68 = vsel %vm60, %v38, 0
    %v71 = vsel %vm60, %v39, 0
    %v74 = vsel %vm60, %v40, 0
    %v77 = vsel %vm60, %v41, 0
    %v80 = vsel %vm60, %v42, 0
    %v83 = vsel %vm60, %v43, 0
    %v86 = vsel %vm60, %v44, 0
    %v89 = vsel %vm60, %v45, 0
    %v92 = vsel %vm60, %v46, 0
    %v95 = vsel %vm60, %v47, 0
    %v98 = vsel %vm60, %v48, 0
    %v101 = vsel %vm60, %v49, 0
    %v104 = vsel %vm60, %v50, 0
    %v107 = vsel %vm60, %v51, 0
    %v110 = vsel %vm60, %v52, 0
    %v113 = vsel %vm60, %v53, 0
    %v116 = vsel %vm60, %v54, 0
    %v119 = vsel %vm60, %v55, 0
    %v122 = vsel %vm60, %v56, 0
    %v125 = vsel %vm60, %v57, 0
    %v128 = vsel %vm60, %v58, 0
    %v131 = vsel %vm60, %v59, 0
    %133 = vmatprep.subr.mxu0 0.0
    %134 = vmatpush1.msra.mxu0 %v32
    %135 = vmatprep.subr.mxu0 0.0
    %136 = vmatpush1.msra.mxu0 %v33
    %137 = vmatprep.subr.mxu0 0.0
    %138 = vmatpush1.msra.mxu0 %v34
    %139 = vmatprep.subr.mxu0 0.0
    %140 = vmatpush1.msra.mxu0 %v35
    %141 = vmatprep.subr.mxu0 0.0
    %142 = vmatpush1.msra.mxu0 0.0
    %143 = vmatprep.subr.mxu0 0.0
    %144 = vmatpush1.msra.mxu0 0.0
    %145 = vmatprep.subr.mxu0 0.0
    %146 = vmatpush1.msra.mxu0 0.0
    %147 = vmatprep.subr.mxu0 0.0
    %148 = vmatpush1.msra.mxu0 0.0
    %149 = vmatprep.subr.mxu0 0.0
    %150 = vmatpush1.msra.mxu0 0.0
    %151 = vmatprep.subr.mxu0 0.0
    %152 = vmatpush1.msra.mxu0 0.0
    %153 = vmatprep.subr.mxu0 0.0
    %154 = vmatpush1.msra.mxu0 0.0
    %155 = vmatprep.subr.mxu0 0.0
    %156 = vmatpush1.msra.mxu0 0.0
    %157 = vmatprep.subr.mxu0 0.0
    %158 = vmatpush1.msra.mxu0 0.0
    %159 = vmatprep.subr.mxu0 0.0
    %160 = vmatpush1.msra.mxu0 0.0
    %161 = vmatprep.subr.mxu0 0.0
    %162 = vmatpush1.msra.mxu0 0.0
    %163 = vmatprep.subr.mxu0 0.0
    %164 = vmatpush1.msra.mxu0 0.0
    %165 = vmatprep.subr.mxu0 0.0
    %166 = vmatpush1.msra.mxu0 0.0
    %167 = vmatprep.subr.mxu0 0.0
    %168 = vmatpush1.msra.mxu0 0.0
    %169 = vmatprep.subr.mxu0 0.0
    %170 = vmatpush1.msra.mxu0 0.0
    %171 = vmatprep.subr.mxu0 0.0
    %172 = vmatpush1.msra.mxu0 0.0
    %173 = vmatprep.subr.mxu0 0.0
    %174 = vmatpush1.msra.mxu0 0.0
    %175 = vmatprep.subr.mxu0 0.0
    %176 = vmatpush1.msra.mxu0 0.0
    %177 = vmatprep.subr.mxu0 0.0
    %178 = vmatpush1.msra.mxu0 0.0
    %179 = vmatprep.subr.mxu0 0.0
    %180 = vmatpush1.msra.mxu0 0.0
    %181 = vmatprep.subr.mxu0 0.0
    %182 = vmatpush1.msra.mxu0 0.0
    %183 = vmatprep.subr.mxu0 0.0
    %184 = vmatpush1.msra.mxu0 0.0
    %185 = vmatprep.subr.mxu0 0.0
    %186 = vmatpush1.msra.mxu0 0.0
    %187 = vmatprep.subr.mxu0 0.0
    %188 = vmatpush1.msra.mxu0 0.0
    %189 = vmatprep.subr.mxu0 0.0
    %190 = vmatpush1.msra.mxu0 0.0
    %191 = vmatprep.subr.mxu0 0.0
    %192 = vmatpush1.msra.mxu0 0.0
    %193 = vmatprep.subr.mxu0 0.0
    %194 = vmatpush1.msra.mxu0 0.0
    %195 = vmatprep.subr.mxu0 0.0
    %196 = vmatpush1.msra.mxu0 0.0
    %197 = vmatprep.mubr.f32.mxu0 0.0
    %198 = vmatmul.mubr.f32.gmra.mrb[0].mxu0 %v62
    %v199 = vpop.f32.mrb[0].mxu0
    %v200 = vadd.f32 0.0, %v199
    %v201 = vpop.f32.mrb[0].mxu0
    %202 = vmatprep.mubr.f32.mxu0 0.0
    %203 = vmatmul.mubr.f32.gmra.mrb[0].mxu0 %v65
    %v204 = vpop.f32.mrb[0].mxu0
    %v205 = vadd.f32 0.0, %v204
    %v206 = vpop.f32.mrb[0].mxu0
    %207 = vmatprep.mubr.f32.mxu0 0.0
    %208 = vmatmul.mubr.f32.gmra.mrb[0].mxu0 %v68
    %v209 = vpop.f32.mrb[0].mxu0
    %v210 = vadd.f32 0.0, %v209
    %v211 = vpop.f32.mrb[0].mxu0
    %212 = vmatprep.mubr.f32.mxu0 0.0
    %213 = vmatmul.mubr.f32.gmra.mrb[0].mxu0 %v71
    %v214 = vpop.f32.mrb[0].mxu0
    %v215 = vadd.f32 0.0, %v214
    %v216 = vpop.f32.mrb[0].mxu0
    %217 = vmatprep.mubr.f32.mxu0 0.0
    %218 = vmatmul.mubr.f32.gmra.mrb[0].mxu0 %v74
    %v219 = vpop.f32.mrb[0].mxu0
    %v220 = vadd.f32 0.0, %v219
    %v221 = vpop.f32.mrb[0].mxu0
    %222 = vmatprep.mubr.f32.mxu0 0.0
    %223 = vmatmul.mubr.f32.gmra.mrb[0].mxu0 %v77
    %v224 = vpop.f32.mrb[0].mxu0
    %v225 = vadd.f32 0.0, %v224
    %v226 = vpop.f32.mrb[0].mxu0
    %227 = vmatprep.mubr.f32.mxu0 0.0
    %228 = vmatmul.mubr.f32.gmra.mrb[0].mxu0 %v80
    %v229 = vpop.f32.mrb[0].mxu0
    %v230 = vadd.f32 0.0, %v229
    %v231 = vpop.f32.mrb[0].mxu0
    %232 = vmatprep.mubr.f32.mxu0 0.0
    %233 = vmatmul.mubr.f32.gmra.mrb[0].mxu0 %v83
    %v234 = vpop.f32.mrb[0].mxu0
    %v235 = vadd.f32 0.0, %v234
    %v236 = vpop.f32.mrb[0].mxu0
    %237 = vmatprep.mubr.f32.mxu0 0.0
    %238 = vmatmul.mubr.f32.gmra.mrb[0].mxu0 %v86
    %v239 = vpop.f32.mrb[0].mxu0
    %v240 = vadd.f32 0.0, %v239
    %v241 = vpop.f32.mrb[0].mxu0
    %242 = vmatprep.mubr.f32.mxu0 0.0
    %243 = vmatmul.mubr.f32.gmra.mrb[0].mxu0 %v89
    %v244 = vpop.f32.mrb[0].mxu0
    %v245 = vadd.f32 0.0, %v244
    %v246 = vpop.f32.mrb[0].mxu0
    %247 = vmatprep.mubr.f32.mxu0 0.0
    %248 = vmatmul.mubr.f32.gmra.mrb[0].mxu0 %v92
    %v249 = vpop.f32.mrb[0].mxu0
    %v250 = vadd.f32 0.0, %v249
    %v251 = vpop.f32.mrb[0].mxu0
    %252 = vmatprep.mubr.f32.mxu0 0.0
    %253 = vmatmul.mubr.f32.gmra.mrb[0].mxu0 %v95
    %v254 = vpop.f32.mrb[0].mxu0
    %v255 = vadd.f32 0.0, %v254
    %v256 = vpop.f32.mrb[0].mxu0
    %257 = vmatprep.mubr.f32.mxu0 0.0
    %258 = vmatmul.mubr.f32.gmra.mrb[0].mxu0 %v98
    %v259 = vpop.f32.mrb[0].mxu0
    %v260 = vadd.f32 0.0, %v259
    %v261 = vpop.f32.mrb[0].mxu0
    %262 = vmatprep.mubr.f32.mxu0 0.0
    %263 = vmatmul.mubr.f32.gmra.mrb[0].mxu0 %v101
    %v264 = vpop.f32.mrb[0].mxu0
    %v265 = vadd.f32 0.0, %v264
    %v266 = vpop.f32.mrb[0].mxu0
    %267 = vmatprep.mubr.f32.mxu0 0.0
    %268 = vmatmul.mubr.f32.gmra.mrb[0].mxu0 %v104
    %v269 = vpop.f32.mrb[0].mxu0
    %v270 = vadd.f32 0.0, %v269
    %v271 = vpop.f32.mrb[0].mxu0
    %272 = vmatprep.mubr.f32.mxu0 0.0
    %273 = vmatmul.mubr.f32.gmra.mrb[0].mxu0 %v107
    %v274 = vpop.f32.mrb[0].mxu0
    %v275 = vadd.f32 0.0, %v274
    %v276 = vpop.f32.mrb[0].mxu0
    %277 = vmatprep.mubr.f32.mxu0 0.0
    %278 = vmatmul.mubr.f32.gmra.mrb[0].mxu0 %v110
    %v279 = vpop.f32.mrb[0].mxu0
    %v280 = vadd.f32 0.0, %v279
    %v281 = vpop.f32.mrb[0].mxu0
    %282 = vmatprep.mubr.f32.mxu0 0.0
    %283 = vmatmul.mubr.f32.gmra.mrb[0].mxu0 %v113
    %v284 = vpop.f32.mrb[0].mxu0
    %v285 = vadd.f32 0.0, %v284
    %v286 = vpop.f32.mrb[0].mxu0
    %287 = vmatprep.mubr.f32.mxu0 0.0
    %288 = vmatmul.mubr.f32.gmra.mrb[0].mxu0 %v116
    %v289 = vpop.f32.mrb[0].mxu0
    %v290 = vadd.f32 0.0, %v289
    %v291 = vpop.f32.mrb[0].mxu0
    %292 = vmatprep.mubr.f32.mxu0 0.0
    %293 = vmatmul.mubr.f32.gmra.mrb[0].mxu0 %v119
    %v294 = vpop.f32.mrb[0].mxu0
    %v295 = vadd.f32 0.0, %v294
    %v296 = vpop.f32.mrb[0].mxu0
    %297 = vmatprep.mubr.f32.mxu0 0.0
    %298 = vmatmul.mubr.f32.gmra.mrb[0].mxu0 %v122
    %v299 = vpop.f32.mrb[0].mxu0
    %v300 = vadd.f32 0.0, %v299
    %v301 = vpop.f32.mrb[0].mxu0
    %302 = vmatprep.mubr.f32.mxu0 0.0
    %303 = vmatmul.mubr.f32.gmra.mrb[0].mxu0 %v125
    %v304 = vpop.f32.mrb[0].mxu0
    %v305 = vadd.f32 0.0, %v304
    %v306 = vpop.f32.mrb[0].mxu0
    %307 = vmatprep.mubr.f32.mxu0 0.0
    %308 = vmatmul.mubr.f32.gmra.mrb[0].mxu0 %v128
    %v309 = vpop.f32.mrb[0].mxu0
    %v310 = vadd.f32 0.0, %v309
    %v311 = vpop.f32.mrb[0].mxu0
    %312 = vmatprep.mubr.f32.mxu0 0.0
    %313 = vmatmul.mubr.f32.gmra.mrb[0].mxu0 %v131
    %v314 = vpop.f32.mrb[0].mxu0
    %v315 = vadd.f32 0.0, %v314
    %v316 = vpop.f32.mrb[0].mxu0
    %317 = vdwg.mxu0
    %326 = vrot.lane.b32.xlu0 %v240, 64
    %v327 = vpop.permute.xlu0 %326
    %328 = vrot.lane.b32.xlu0 %v245, 64
    %v329 = vpop.permute.xlu0 %328
    %330 = vrot.lane.b32.xlu0 %v250, 64
    %v331 = vpop.permute.xlu0 %330
    %332 = vrot.lane.b32.xlu0 %v255, 64
    %v333 = vpop.permute.xlu0 %332
    %334 = vrot.lane.b32.xlu0 %v260, 64
    %v335 = vpop.permute.xlu0 %334
    %336 = vrot.lane.b32.xlu0 %v265, 64
    %v337 = vpop.permute.xlu0 %336
    %338 = vrot.lane.b32.xlu0 %v270, 64
    %v339 = vpop.permute.xlu0 %338
    %340 = vrot.lane.b32.xlu0 %v275, 64
    %v341 = vpop.permute.xlu0 %340
    %vm350 = vcmask 523264
    %v351 = vsel %vm350, %v200, %v327
    %v352 = vsel %vm350, %v205, %v329
    %v353 = vsel %vm350, %v210, %v331
    %v354 = vsel %vm350, %v215, %v333
    %v355 = vsel %vm350, %v220, %v335
    %v356 = vsel %vm350, %v225, %v337
    %v357 = vsel %vm350, %v230, %v339
    %v358 = vsel %vm350, %v235, %v341
    %v359 = vld [vmem:[#allocation2] sm:$0xff]
    %v360 = vld [vmem:[#allocation2 + $0x8] sm:$0xff]
    %v361 = vld [vmem:[#allocation2 + $0x10] sm:$0xff]
    %v362 = vld [vmem:[#allocation2 + $0x18] sm:$0xff]
    %v363 = vld [vmem:[#allocation2 + $0x20] sm:$0xff]
    %v364 = vld [vmem:[#allocation2 + $0x28] sm:$0xff]
    %v365 = vld [vmem:[#allocation2 + $0x30] sm:$0xff]
    %v366 = vld [vmem:[#allocation2 + $0x38] sm:$0xff]
    %v367 = vld [vmem:[#allocation2 + $0x40] sm:$0xff]
    %v368 = vld [vmem:[#allocation2 + $0x48] sm:$0xff]
    %v369 = vld [vmem:[#allocation2 + $0x50] sm:$0xff]
    %v370 = vld [vmem:[#allocation2 + $0x58] sm:$0xff]
    %v371 = vld [vmem:[#allocation2 + $0x60] sm:$0xff]
    %v372 = vld [vmem:[#allocation2 + $0x68] sm:$0xff]
    %v373 = vld [vmem:[#allocation2 + $0x70] sm:$0xff]
    %v374 = vld [vmem:[#allocation2 + $0x78] sm:$0xff]
    %v375 = vld [vmem:[#allocation2 + $0x80] sm:$0xff]
    %v376 = vld [vmem:[#allocation2 + $0x88] sm:$0xff]
    %v377 = vld [vmem:[#allocation2 + $0x90] sm:$0xff]
    %v378 = vld [vmem:[#allocation2 + $0x98] sm:$0xff]
    %v379 = vld [vmem:[#allocation2 + $0xa0] sm:$0xff]
    %v380 = vld [vmem:[#allocation2 + $0xa8] sm:$0xff]
    %v381 = vld [vmem:[#allocation2 + $0xb0] sm:$0xff]
    %v382 = vld [vmem:[#allocation2 + $0xb8] sm:$0xff]
    %v383 = vld [vmem:[#allocation2 + $0xc0] sm:$0xff]
    %v384 = vld [vmem:[#allocation2 + $0xc8] sm:$0xff]
    %v385 = vld [vmem:[#allocation2 + $0xd0] sm:$0xff]
    %v386 = vld [vmem:[#allocation2 + $0xd8] sm:$0xff]
    %v387 = vld [vmem:[#allocation2 + $0xe0] sm:$0xff]
    %v388 = vld [vmem:[#allocation2 + $0xe8] sm:$0xff]
    %v389 = vld [vmem:[#allocation2 + $0xf0] sm:$0xff]
    %v390 = vld [vmem:[#allocation2 + $0xf8] sm:$0xff]
    %v391 = vld [vmem:[#allocation2 + $0x100] sm:$0xff]
    %v392 = vld [vmem:[#allocation2 + $0x108] sm:$0xff]
    %v393 = vld [vmem:[#allocation2 + $0x110] sm:$0xff]
    %v394 = vld [vmem:[#allocation2 + $0x118] sm:$0xff]
    %v395 = vld [vmem:[#allocation2 + $0x120] sm:$0xff]
    %v396 = vld [vmem:[#allocation2 + $0x128] sm:$0xff]
    %v397 = vld [vmem:[#allocation2 + $0x130] sm:$0xff]
    %v398 = vld [vmem:[#allocation2 + $0x138] sm:$0xff]
    %v399 = vld [vmem:[#allocation2 + $0x140] sm:$0xff]
    %v400 = vld [vmem:[#allocation2 + $0x148] sm:$0xff]
    %v401 = vld [vmem:[#allocation2 + $0x150] sm:$0xff]
    %v402 = vld [vmem:[#allocation2 + $0x158] sm:$0xff]
    %v403 = vld [vmem:[#allocation2 + $0x160] sm:$0xff]
    %v404 = vld [vmem:[#allocation2 + $0x168] sm:$0xff]
    %v405 = vld [vmem:[#allocation2 + $0x170] sm:$0xff]
    %v406 = vld [vmem:[#allocation2 + $0x178] sm:$0xff]
    %v407 = vld [vmem:[%s3] sm:$0x3]
    %v409 = vlaneseq
    %v410 = vshrl.u32 %v409, 7
    %v411 = vsub.s32 0, %v410
    %v412 = vrot.slane %v407, %v411
    %v413 = vlaneseq
    %v414 = vshrl.u32 %v413, 7
    %v415 = vsub.s32 1, %v414
    %v416 = vrot.slane %v407, %v415
    %v420 = vsel %vm350, %v280, 0
    %v423 = vsel %vm350, %v285, 0
    %v426 = vsel %vm350, %v290, 0
    %v429 = vsel %vm350, %v295, 0
    %v432 = vsel %vm350, %v300, 0
    %v435 = vsel %vm350, %v305, 0
    %v438 = vsel %vm350, %v310, 0
    %v441 = vsel %vm350, %v315, 0
    %443 = vmatprep.subr.mxu0 %v360
    %444 = vmatpush1.msra.mxu0 %v359
    %445 = vmatprep.subr.mxu0 %v362
    %446 = vmatpush1.msra.mxu0 %v361
    %447 = vmatprep.subr.mxu0 %v364
    %448 = vmatpush1.msra.mxu0 %v363
    %449 = vmatprep.subr.mxu0 %v366
    %450 = vmatpush1.msra.mxu0 %v365
    %451 = vmatprep.subr.mxu0 %v368
    %452 = vmatpush1.msra.mxu0 %v367
    %453 = vmatprep.subr.mxu0 %v370
    %454 = vmatpush1.msra.mxu0 %v369
    %455 = vmatprep.subr.mxu0 %v372
    %456 = vmatpush1.msra.mxu0 %v371
    %457 = vmatprep.subr.mxu0 %v374
    %458 = vmatpush1.msra.mxu0 %v373
    %459 = vmatprep.subr.mxu0 %v376
    %460 = vmatpush1.msra.mxu0 %v375
    %461 = vmatprep.subr.mxu0 %v378
    %462 = vmatpush1.msra.mxu0 %v377
    %463 = vmatprep.subr.mxu0 %v380
    %464 = vmatpush1.msra.mxu0 %v379
    %465 = vmatprep.subr.mxu0 %v382
    %466 = vmatpush1.msra.mxu0 %v381
    %467 = vmatprep.subr.mxu0 %v384
    %468 = vmatpush1.msra.mxu0 %v383
    %469 = vmatprep.subr.mxu0 %v386
    %470 = vmatpush1.msra.mxu0 %v385
    %471 = vmatprep.subr.mxu0 %v388
    %472 = vmatpush1.msra.mxu0 %v387
    %473 = vmatprep.subr.mxu0 %v390
    %474 = vmatpush1.msra.mxu0 %v389
    %475 = vmatprep.subr.mxu0 %v392
    %476 = vmatpush1.msra.mxu0 %v391
    %477 = vmatprep.subr.mxu0 %v394
    %478 = vmatpush1.msra.mxu0 %v393
    %479 = vmatprep.subr.mxu0 %v396
    %480 = vmatpush1.msra.mxu0 %v395
    %481 = vmatprep.subr.mxu0 %v398
    %482 = vmatpush1.msra.mxu0 %v397
    %483 = vmatprep.subr.mxu0 %v400
    %484 = vmatpush1.msra.mxu0 %v399
    %485 = vmatprep.subr.mxu0 %v402
    %486 = vmatpush1.msra.mxu0 %v401
    %487 = vmatprep.subr.mxu0 %v404
    %488 = vmatpush1.msra.mxu0 %v403
    %489 = vmatprep.subr.mxu0 %v406
    %490 = vmatpush1.msra.mxu0 %v405
    %491 = vmatprep.subr.mxu0 0.0
    %492 = vmatpush1.msra.mxu0 0.0
    %493 = vmatprep.subr.mxu0 0.0
    %494 = vmatpush1.msra.mxu0 0.0
    %495 = vmatprep.subr.mxu0 0.0
    %496 = vmatpush1.msra.mxu0 0.0
    %497 = vmatprep.subr.mxu0 0.0
    %498 = vmatpush1.msra.mxu0 0.0
    %499 = vmatprep.subr.mxu0 0.0
    %500 = vmatpush1.msra.mxu0 0.0
    %501 = vmatprep.subr.mxu0 0.0
    %502 = vmatpush1.msra.mxu0 0.0
    %503 = vmatprep.subr.mxu0 0.0
    %504 = vmatpush1.msra.mxu0 0.0
    %505 = vmatprep.subr.mxu0 0.0
    %506 = vmatpush1.msra.mxu0 0.0
    %507 = vmatprep.mubr.f32.mxu0 %v420
    %508 = vmatmul.mubr.f32.gmra.mrb[0].mxu0 %v351
    %v509 = vpop.f32.mrb[0].mxu0
    %v510 = vadd.f32 %v412, %v509
    %v511 = vpop.f32.mrb[0].mxu0
    %v512 = vadd.f32 %v416, %v511
    %513 = vmatprep.mubr.f32.mxu0 %v423
    %514 = vmatmul.mubr.f32.gmra.mrb[0].mxu0 %v352
    %v515 = vpop.f32.mrb[0].mxu0
    %v516 = vadd.f32 %v412, %v515
    %v517 = vpop.f32.mrb[0].mxu0
    %v518 = vadd.f32 %v416, %v517
    %519 = vmatprep.mubr.f32.mxu0 %v426
    %520 = vmatmul.mubr.f32.gmra.mrb[0].mxu0 %v353
    %v521 = vpop.f32.mrb[0].mxu0
    %v522 = vadd.f32 %v412, %v521
    %v523 = vpop.f32.mrb[0].mxu0
    %v524 = vadd.f32 %v416, %v523
    %525 = vmatprep.mubr.f32.mxu0 %v429
    %526 = vmatmul.mubr.f32.gmra.mrb[0].mxu0 %v354
    %v527 = vpop.f32.mrb[0].mxu0
    %v528 = vadd.f32 %v412, %v527
    %v529 = vpop.f32.mrb[0].mxu0
    %v530 = vadd.f32 %v416, %v529
    %531 = vmatprep.mubr.f32.mxu0 %v432
    %532 = vmatmul.mubr.f32.gmra.mrb[0].mxu0 %v355
    %v533 = vpop.f32.mrb[0].mxu0
    %v534 = vadd.f32 %v412, %v533
    %v535 = vpop.f32.mrb[0].mxu0
    %v536 = vadd.f32 %v416, %v535
    %537 = vmatprep.mubr.f32.mxu0 %v435
    %538 = vmatmul.mubr.f32.gmra.mrb[0].mxu0 %v356
    %v539 = vpop.f32.mrb[0].mxu0
    %v540 = vadd.f32 %v412, %v539
    %v541 = vpop.f32.mrb[0].mxu0
    %v542 = vadd.f32 %v416, %v541
    %543 = vmatprep.mubr.f32.mxu0 %v438
    %544 = vmatmul.mubr.f32.gmra.mrb[0].mxu0 %v357
    %v545 = vpop.f32.mrb[0].mxu0
    %v546 = vadd.f32 %v412, %v545
    %v547 = vpop.f32.mrb[0].mxu0
    %v548 = vadd.f32 %v416, %v547
    %549 = vmatprep.mubr.f32.mxu0 %v441
    %550 = vmatmul.mubr.f32.gmra.mrb[0].mxu0 %v358
    %v551 = vpop.f32.mrb[0].mxu0
    %v552 = vadd.f32 %v412, %v551
    %v553 = vpop.f32.mrb[0].mxu0
    %v554 = vadd.f32 %v416, %v553
    %555 = vdwg.mxu0
    %v556 = vmax.f32 %v510, 0.0
    %v557 = vmax.f32 %v512, 0.0
    %v558 = vmax.f32 %v516, 0.0
    %v559 = vmax.f32 %v518, 0.0
    %v560 = vmax.f32 %v522, 0.0
    %v561 = vmax.f32 %v524, 0.0
    %v562 = vmax.f32 %v528, 0.0
    %v563 = vmax.f32 %v530, 0.0
    %v564 = vmax.f32 %v534, 0.0
    %v565 = vmax.f32 %v536, 0.0
    %v566 = vmax.f32 %v540, 0.0
    %v567 = vmax.f32 %v542, 0.0
    %v568 = vmax.f32 %v546, 0.0
    %v569 = vmax.f32 %v548, 0.0
    %v570 = vmax.f32 %v552, 0.0
    %v571 = vmax.f32 %v554, 0.0
    %572 = vst [vmem:[#allocation5] sm:$0xff] %v556
    %573 = vst [vmem:[#allocation5 + $0x8] sm:$0xff] %v557
    %574 = vst [vmem:[#allocation5 + $0x10] sm:$0xff] %v558
    %575 = vst [vmem:[#allocation5 + $0x18] sm:$0xff] %v559
    %576 = vst [vmem:[#allocation5 + $0x20] sm:$0xff] %v560
    %577 = vst [vmem:[#allocation5 + $0x28] sm:$0xff] %v561
    %578 = vst [vmem:[#allocation5 + $0x30] sm:$0xff] %v562
    %579 = vst [vmem:[#allocation5 + $0x38] sm:$0xff] %v563
    %580 = vst [vmem:[#allocation5 + $0x40] sm:$0xff] %v564
    %581 = vst [vmem:[#allocation5 + $0x48] sm:$0xff] %v565
    %582 = vst [vmem:[#allocation5 + $0x50] sm:$0xff] %v566
    %583 = vst [vmem:[#allocation5 + $0x58] sm:$0xff] %v567
    %584 = vst [vmem:[#allocation5 + $0x60] sm:$0xff] %v568
    %585 = vst [vmem:[#allocation5 + $0x68] sm:$0xff] %v569
    %586 = vst [vmem:[#allocation5 + $0x70] sm:$0xff] %v570
    %587 = vst [vmem:[#allocation5 + $0x78] sm:$0xff] %v571
    // Predicated region
    $region22: #{tpu_custom_call.1} parent=1 // pred_check
      _
    $region23: #{tpu_custom_call.1} parent=1 // pred_check_branch
      %589 = sbr.rel (0) target = $region25
    $region24: #{tpu_custom_call.1} parent=1 // pred_region
      %s591 = ssub.s32 2048, 2048
      %592 = vsyncadd [#allocation4], %s591
      %s593 = sshll.u32 [#allocation5], 4
      %s594 = int_to_ptr.vmem [resolvable:$true] %s593
      %599 = dma.vmem_to_hbm [thread:$0]  %s594, 2048, %s4, [#allocation4], 256, 256, 16
    $region25: #{tpu_custom_call.1} parent=1 // pred_fallthru
      _
    // Predicated region
    $region26: #{tpu_custom_call.1} parent=1 // pred_check
      _
    $region27: #{tpu_custom_call.1} parent=1 // pred_check_branch
      %601 = sbr.rel (0) target = $region29
    $region28: #{tpu_custom_call.1} parent=1 // pred_region
      %602 = dma.done [#allocation4], 2048
    $region29: #{tpu_custom_call.1} parent=1 // pred_fallthru
      _
    %603 = vsyncpa [#allocation3], 1
    %604 = vsyncpa [#allocation4], 1

</llo_original>
